<compile_context>
chip_gen: v5e
topology: v5e:2x2
jax: 0.10.0
libtpu: 0.0.40
codegen_flags: <defaults>
</compile_context>

<pallas_src>
import functools

import jax
import jax.numpy as jnp
from jax import lax
from jax.experimental import pallas as pl
from jax.experimental.pallas import tpu as pltpu


_SMALL_LIMIT_BYTES = 8 * 1024 * 1024    # fast-path VMEM footprint budget
_FORCE_BLOCK_BYTES = 1 * 1024 * 1024    # ~1 MiB force tiles on the large path
_VMEM_LIMIT_BYTES = 32 * 1024 * 1024    # safe on v5e/v6e (128 MiB) and v7x (64 MiB)


def _ceil_to(x, m):
    return -(-x // m) * m


def _sublane_pack(dtype):
    return {4: 8, 2: 16, 1: 32}.get(jnp.dtype(dtype).itemsize, 8)


def _as_2d(x):
    """Free (bitcast) reshape of a contiguous array to a lane-dense 2-D view.

    Picks rows = largest dtype-pack-friendly divisor of the element count so the
    view is dense in both sublanes and lanes whenever possible.  No padding, no
    data movement.
    """
    n = int(x.size)
    pack = _sublane_pack(x.dtype)
    rows = 1
    for d in (pack, 8, 4, 2):
        if d <= n and n % d == 0:
            rows = d
            break
    return x.reshape(rows, n // rows), n


def _vmem_bytes_2d(shape, dtype):
    """Padded VMEM footprint of a full-array block with this 2-D shape."""
    r, c = shape
    item = jnp.dtype(dtype).itemsize
    return _ceil_to(r, _sublane_pack(dtype)) * _ceil_to(c, 128) * item


def _per_elem(pred, targ, loss_type):
    d = pred.astype(jnp.float32) - targ.astype(jnp.float32)
    return jnp.abs(d) if loss_type == "mae" else d * d


# ---------------------------------------------------------------------------
# Fast path: everything fits in VMEM -> single pallas_call, no grid, no pad.
# ---------------------------------------------------------------------------
def _small_fused_kernel(ep_ref, et_ref, fp_ref, ft_ref, out_ref, *,
                        n_e, n_f, alpha, loss_type):
    e_sum = jnp.sum(_per_elem(ep_ref[...], et_ref[...], loss_type))
    f_sum = jnp.sum(_per_elem(fp_ref[...], ft_ref[...], loss_type))
    loss = 0.5 * (e_sum * (1.0 / n_e) + alpha * f_sum * (1.0 / n_f))
    out_ref[...] = loss.astype(jnp.float32).reshape(1, 1)


def _small_energy_kernel(ep_ref, et_ref, out_ref, *, n_e, loss_type):
    e_sum = jnp.sum(_per_elem(ep_ref[...], et_ref[...], loss_type))
    out_ref[...] = (0.5 * e_sum * (1.0 / n_e)).astype(jnp.float32).reshape(1, 1)


# ---------------------------------------------------------------------------
# Large-force fallback: lane-dense column tiles, ragged tail masked in-kernel,
# leading size-2 "parallel" axis so v7x splits the tiles across both cores.
# ---------------------------------------------------------------------------
def _tiled_fused_kernel(ep_ref, et_ref, fp_ref, ft_ref, e_out_ref, f_out_ref, *,
                        nt, nt_half, tile_cols, m, needs_mask, loss_type):
    c = pl.program_id(0)   # TensorCore / half index ("parallel")
    j = pl.program_id(1)   # force tile within this half ("arbitrary")

    @pl.when(j == 0)
    def _():
        # Fold the (tiny) energy term in once, on core 0 only; init force acc.
        e_sum = jnp.sum(_per_elem(ep_ref[...], et_ref[...], loss_type))
        e_out_ref[...] = jnp.where(c == 0, e_sum, 0.0).astype(
            jnp.float32).reshape(1, 1, 1)
        f_out_ref[...] = jnp.zeros_like(f_out_ref)

    x = _per_elem(fp_ref[...], ft_ref[...], loss_type)   # (rows, tile_cols) f32
    if needs_mask:
        # Ragged tail / over-covered tiles: zero out columns beyond the true
        # element count (no host-side padding was ever materialized).
        t = c * nt_half + j
        col = lax.broadcasted_iota(jnp.int32, x.shape, 1)
        start = jnp.minimum(t, nt - 1) * tile_cols
        valid = jnp.logical_and(start + col < m, t < nt)
        x = jnp.where(valid, x, 0.0)
    f_out_ref[...] += jnp.sum(x).astype(jnp.float32).reshape(1, 1, 1)


# ---------------------------------------------------------------------------
# jit wrappers
# ---------------------------------------------------------------------------
@functools.partial(jax.jit, static_argnames=("alpha", "loss_type"))
def _fused_loss(energy_pred, energy_target, force_pred, force_target, *,
                alpha, loss_type):
    ep2, n_e = _as_2d(energy_pred)
    et2, _ = _as_2d(energy_target)
    fp2, n_f = _as_2d(force_pred)
    ft2, _ = _as_2d(force_target)

    footprint = (_vmem_bytes_2d(ep2.shape, ep2.dtype)
                 + _vmem_bytes_2d(et2.shape, et2.dtype)
                 + _vmem_bytes_2d(fp2.shape, fp2.dtype)
                 + _vmem_bytes_2d(ft2.shape, ft2.dtype))

    if footprint <= _SMALL_LIMIT_BYTES:
        kernel = functools.partial(_small_fused_kernel, n_e=n_e, n_f=n_f,
                                   alpha=float(alpha), loss_type=loss_type)
        out = pl.pallas_call(
            kernel,
            out_shape=jax.ShapeDtypeStruct((1, 1), jnp.float32),
            compiler_params=pltpu.CompilerParams(
                vmem_limit_bytes=_VMEM_LIMIT_BYTES),
        )(ep2, et2, fp2, ft2)
        return out[0, 0]

    # ---- large force tensors: column-tiled grid over the (rows, m) view ----
    rows_f, m = fp2.shape
    item = jnp.dtype(fp2.dtype).itemsize
    padded_rows = _ceil_to(rows_f, _sublane_pack(fp2.dtype))
    tile_cols = max(128, (_FORCE_BLOCK_BYTES // (padded_rows * item)) // 128 * 128)
    tile_cols = min(tile_cols, _ceil_to(m, 128))
    nt = pl.cdiv(m, tile_cols)
    nt_half = pl.cdiv(nt, 2)
    needs_mask = (m % tile_cols != 0) or (2 * nt_half != nt)

    kernel = functools.partial(
        _tiled_fused_kernel, nt=nt, nt_half=nt_half, tile_cols=tile_cols, m=m,
        needs_mask=needs_mask, loss_type=loss_type)
    fmap = lambda c, j: (0, jnp.minimum(c * nt_half + j, nt - 1))

    e_part, f_part = pl.pallas_call(
        kernel,
        out_shape=(jax.ShapeDtypeStruct((2, 1, 1), jnp.float32),
                   jax.ShapeDtypeStruct((2, 1, 1), jnp.float32)),
        grid_spec=pltpu.PrefetchScalarGridSpec(
            num_scalar_prefetch=0,
            grid=(2, nt_half),
            in_specs=[
                pl.BlockSpec(ep2.shape, lambda c, j: (0, 0)),
                pl.BlockSpec(et2.shape, lambda c, j: (0, 0)),
                pl.BlockSpec((rows_f, tile_cols), fmap),
                pl.BlockSpec((rows_f, tile_cols), fmap),
            ],
            out_specs=[
                pl.BlockSpec((1, 1, 1), lambda c, j: (c, 0, 0)),
                pl.BlockSpec((1, 1, 1), lambda c, j: (c, 0, 0)),
            ],
        ),
        compiler_params=pltpu.CompilerParams(
            dimension_semantics=("parallel", "arbitrary"),
            vmem_limit_bytes=_VMEM_LIMIT_BYTES),
    )(ep2, et2, fp2, ft2)

    # Tiny epilogue: combine the per-core partial sums and scale.
    e_loss = jnp.sum(e_part) * (1.0 / n_e)
    f_loss = jnp.sum(f_part) * (1.0 / n_f)
    return 0.5 * (e_loss + jnp.float32(alpha) * f_loss)


@functools.partial(jax.jit, static_argnames=("loss_type",))
def _energy_only_loss(energy_pred, energy_target, *, loss_type):
    # TODO(synk): energies are per-image scalars; assumed to fit one VMEM block.
    ep2, n_e = _as_2d(energy_pred)
    et2, _ = _as_2d(energy_target)
    kernel = functools.partial(_small_energy_kernel, n_e=n_e, loss_type=loss_type)
    out = pl.pallas_call(
        kernel,
        out_shape=jax.ShapeDtypeStruct((1, 1), jnp.float32),
        compiler_params=pltpu.CompilerParams(
            vmem_limit_bytes=_VMEM_LIMIT_BYTES),
    )(ep2, et2)
    return out[0, 0]


class CustomLossPallas:
    """JAX/Pallas port of amptorch CustomLoss (forward pass)."""

    def __init__(self, force_coefficient=0, loss="mae"):
        self.alpha = force_coefficient
        if loss not in ("mae", "mse"):
            raise NotImplementedError(f"{loss} loss not available!")
        self.loss_type = loss

    def __call__(self, prediction, target):
        energy_pred = prediction[0]
        energy_target = target[0]
        force_pred = prediction[1]
        assert energy_pred.shape == energy_target.shape, \
            "energy pred/target shape mismatch"

        # Mirrors the original module's persistent `self.alpha = 0` mutation
        # when forces are empty (spec fidelity, including the side effect).
        if force_pred.size == 0:
            self.alpha = 0

        if self.alpha > 0:
            force_target = target[1]
            assert force_pred.shape == force_target.shape, \
                "force pred/target shape mismatch"
            return _fused_loss(energy_pred, energy_target,
                               force_pred, force_target,
                               alpha=float(self.alpha),
                               loss_type=self.loss_type)
        return _energy_only_loss(energy_pred, energy_target,
                                 loss_type=self.loss_type)


if __name__ == "__main__":
    key = jax.random.PRNGKey(0)
    k1, k2, k3, k4, k5, k6 = jax.random.split(key, 6)

    # Small shapes consistent with the module: per-image energies, per-atom
    # 3-D forces.
    batch, n_atoms = 8, 16
    energy_pred = jax.random.normal(k1, (batch, 1), dtype=jnp.float32)
    energy_target = jax.random.normal(k2, (batch, 1), dtype=jnp.float32)
    force_pred = jax.random.normal(k3, (n_atoms, 3), dtype=jnp.float32)
    force_target = jax.random.normal(k4, (n_atoms, 3), dtype=jnp.float32)

    alpha = 0.04
    e_ref = jnp.mean(jnp.abs(energy_pred - energy_target))
    f_ref = jnp.mean(jnp.abs(force_pred - force_target))

    # 1) Fused energy + force (MAE), fast single-block path.
    criterion = CustomLossPallas(force_coefficient=alpha, loss="mae")
    loss = jax.block_until_ready(
        criterion((energy_pred, force_pred), (energy_target, force_target)))
    ref = 0.5 * (e_ref + alpha * f_ref)
    assert jnp.allclose(loss, ref, rtol=1e-5, atol=1e-6), (loss, ref)

    # 2) Energy-only path (alpha == 0).
    criterion0 = CustomLossPallas(force_coefficient=0, loss="mae")
    loss0 = jax.block_until_ready(
        criterion0((energy_pred, force_pred), (energy_target, force_target)))
    assert jnp.allclose(loss0, 0.5 * e_ref, rtol=1e-5, atol=1e-6), (loss0,)

    # 3) MSE path.
    criterion_mse = CustomLossPallas(force_coefficient=alpha, loss="mse")
    loss_mse = jax.block_until_ready(
        criterion_mse((energy_pred, force_pred), (energy_target, force_target)))
    e_ref2 = jnp.mean((energy_pred - energy_target) ** 2)
    f_ref2 = jnp.mean((force_pred - force_target) ** 2)
    ref_mse = 0.5 * (e_ref2 + alpha * f_ref2)
    assert jnp.allclose(loss_mse, ref_mse, rtol=1e-5, atol=1e-6), (loss_mse, ref_mse)

    # 4) Larger force tensor -> exercises the tiled, 2-core, masked-tail path.
    big_atoms = 400_000  # 1.2M elements -> column-tiled grid with ragged tail
    big_fp = jax.random.normal(k5, (big_atoms, 3), dtype=jnp.float32)
    big_ft = jax.random.normal(k6, (big_atoms, 3), dtype=jnp.float32)
    criterion_big = CustomLossPallas(force_coefficient=alpha, loss="mae")
    loss_big = jax.block_until_ready(
        criterion_big((energy_pred, big_fp), (energy_target, big_ft)))
    ref_big = 0.5 * (e_ref + alpha * jnp.mean(jnp.abs(big_fp - big_ft)))
    assert jnp.allclose(loss_big, ref_big, rtol=1e-4, atol=1e-6), (loss_big, ref_big)

    print("KERNEL_OK")
</pallas_src>

<mosaic_0001>
module attributes {stable_mosaic.version = 11 : i64} {
  func.func @_small_fused_kernel(%arg0: memref<8x1xf32, #tpu.memory_space<vmem>>, %arg1: memref<8x1xf32, #tpu.memory_space<vmem>>, %arg2: memref<8x6xf32, #tpu.memory_space<vmem>>, %arg3: memref<8x6xf32, #tpu.memory_space<vmem>>, %arg4: memref<1x1xf32, #tpu.memory_space<vmem>>) attributes {dimension_semantics = [], scalar_prefetch = 0 : i64, scratch_operands = 0 : i64, tpu.core_type = #tpu.core_type<tc>} {
    %c0 = arith.constant 0 : index
    %c0_0 = arith.constant 0 : index
    %0 = vector.load %arg0[%c0, %c0_0] : memref<8x1xf32, #tpu.memory_space<vmem>>, vector<8x1xf32>
    %c0_1 = arith.constant 0 : index
    %c0_2 = arith.constant 0 : index
    %1 = vector.load %arg1[%c0_1, %c0_2] : memref<8x1xf32, #tpu.memory_space<vmem>>, vector<8x1xf32>
    %2 = arith.subf %0, %1 : vector<8x1xf32>
    %3 = math.absf %2 : vector<8x1xf32>
    %4 = vector.shape_cast %3 : vector<8x1xf32> to vector<1x8x1xf32>
    %cst = arith.constant dense<0.000000e+00> : vector<1xf32>
    %5 = vector.multi_reduction <add>, %4, %cst [1, 2] : vector<1x8x1xf32> to vector<1xf32>
    %6 = vector.shape_cast %5 : vector<1xf32> to vector<1x1x1xf32>
    %7 = vector.extract %6[0, 0, 0] : f32 from vector<1x1x1xf32>
    %c0_3 = arith.constant 0 : index
    %c0_4 = arith.constant 0 : index
    %8 = vector.load %arg2[%c0_3, %c0_4] : memref<8x6xf32, #tpu.memory_space<vmem>>, vector<8x6xf32>
    %c0_5 = arith.constant 0 : index
    %c0_6 = arith.constant 0 : index
    %9 = vector.load %arg3[%c0_5, %c0_6] : memref<8x6xf32, #tpu.memory_space<vmem>>, vector<8x6xf32>
    %10 = arith.subf %8, %9 : vector<8x6xf32>
    %11 = math.absf %10 : vector<8x6xf32>
    %12 = vector.shape_cast %11 : vector<8x6xf32> to vector<1x8x6xf32>
    %cst_7 = arith.constant dense<0.000000e+00> : vector<1xf32>
    %13 = vector.multi_reduction <add>, %12, %cst_7 [1, 2] : vector<1x8x6xf32> to vector<1xf32>
    %14 = vector.shape_cast %13 : vector<1xf32> to vector<1x1x1xf32>
    %15 = vector.extract %14[0, 0, 0] : f32 from vector<1x1x1xf32>
    %cst_8 = arith.constant 1.250000e-01 : f32
    %16 = arith.mulf %7, %cst_8 : f32
    %cst_9 = arith.constant 4.000000e-02 : f32
    %17 = arith.mulf %cst_9, %15 : f32
    %cst_10 = arith.constant 0.020833334 : f32
    %18 = arith.mulf %17, %cst_10 : f32
    %19 = arith.addf %16, %18 : f32
    %cst_11 = arith.constant 5.000000e-01 : f32
    %20 = arith.mulf %cst_11, %19 : f32
    %21 = vector.broadcast %20 : f32 to vector<1x1xf32>
    %c0_12 = arith.constant 0 : index
    %c0_13 = arith.constant 0 : index
    %22 = vector.load %arg4[%c0_12, %c0_13] : memref<1x1xf32, #tpu.memory_space<vmem>>, vector<1x1xf32>
    tpu.vector_store %arg4[%c0_12, %c0_13], %21 {strides = array<i32>} : memref<1x1xf32, #tpu.memory_space<vmem>>, vector<1x1xf32>,
    return
  }
}

</mosaic_0001>

<llo_original>
// kernel: _fused_loss.1
$region0: #{_fused_loss.1}
  #allocation0 [shape = 'u32[]', space=smem, size = 0x4, offset = 0x4, fixed_abs, tag = 'smem constant byte address 0x4 - core index']
  #allocation1 [shape = 'u32[72,128]{1,0:T(1,128)}', space=vmem, size = 0x9000, scoped, tag = 'internal scratch']
  %s0 = inlined_call_operand.vmem [shape: f32[8,1], index: 0, kind: input, shape index: {}]
  %s1 = inlined_call_operand.vmem [shape: f32[8,1], index: 1, kind: input, shape index: {}]
  %s2 = inlined_call_operand.vmem [shape: f32[8,6], index: 2, kind: input, shape index: {}]
  %s3 = inlined_call_operand.vmem [shape: f32[8,6], index: 3, kind: input, shape index: {}]
  %s4 = inlined_call_operand.hbm [shape: f32[1,1], index: 4, kind: output, shape index: {}]
  %s5 = sld [smem:[#allocation0]]
  $region26: #{_fused_loss.1} parent=0
    _
  %s7 = ssub.s32 1, %s5
  %s8 = scalar_select 0, %s7, %s5
  $region1: #{_fused_loss.1} parent=0
    #allocation2 [shape = 'u8[512]{0}', space=vmem, size = 0x400, scoped, tag = 'output window, operand 0, single buffered']
    #allocation3 [shape = 's32[1]{0}', space=sflag, size = 0x4, scoped, tag = 'scoped memory for _fused_loss.1']
    %9 = vsyncpa [#allocation3], 0
    // Predicated region
    $region2: #{_fused_loss.1} parent=1 // pred_check
      _
    $region3: #{_fused_loss.1} parent=1 // pred_check_branch
      %11 = sbr.rel (0) target = $region5
    $region4: #{_fused_loss.1} parent=1 // pred_region
      _
    $region5: #{_fused_loss.1} parent=1 // pred_fallthru
      _
    // Predicated region
    $region6: #{_fused_loss.1} parent=1 // pred_check
      _
    $region7: #{_fused_loss.1} parent=1 // pred_check_branch
      %13 = sbr.rel (0) target = $region9
    $region8: #{_fused_loss.1} parent=1 // pred_region
      _
    $region9: #{_fused_loss.1} parent=1 // pred_fallthru
      _
    // Predicated region
    $region10: #{_fused_loss.1} parent=1 // pred_check
      _
    $region11: #{_fused_loss.1} parent=1 // pred_check_branch
      %15 = sbr.rel (0) target = $region13
    $region12: #{_fused_loss.1} parent=1 // pred_region
      _
    $region13: #{_fused_loss.1} parent=1 // pred_fallthru
      _
    // Predicated region
    $region14: #{_fused_loss.1} parent=1 // pred_check
      _
    $region15: #{_fused_loss.1} parent=1 // pred_check_branch
      %17 = sbr.rel (0) target = $region17
    $region16: #{_fused_loss.1} parent=1 // pred_region
      _
    $region17: #{_fused_loss.1} parent=1 // pred_fallthru
      _
    %v18 = vld [vmem:[%s0] sm:$0xff]
    %v19 = vld [vmem:[%s1] sm:$0xff]
    %v20 = vsub.f32 %v18, %v19
    %v21 = vand.u32 2147483647, %v20
    %vm22 = vcmask 7168
    %v23 = vsel %vm22, %v21, 0.0
    %24 = vadd.xlane.f32.xlu0 %v23
    %v25 = vpop.xlane.xlu0 %24
    %v26 = vrot.slane %v25, 4
    %v27 = vadd.f32 %v25, %v26
    %v28 = vrot.slane %v27, 2
    %v29 = vadd.f32 %v27, %v28
    %v30 = vrot.slane %v29, 1
    %v31 = vadd.f32 %v29, %v30
    %s32 = vtos %v31
    %v33 = vld [vmem:[%s2] sm:$0xff]
    %v34 = vld [vmem:[%s3] sm:$0xff]
    %v35 = vsub.f32 %v33, %v34
    %v36 = vand.u32 2147483647, %v35
    %vm37 = vcmask 48128
    %v38 = vsel %vm37, %v36, 0.0
    %39 = vadd.xlane.f32.xlu0 %v38
    %v40 = vpop.xlane.xlu0 %39
    %v41 = vrot.slane %v40, 4
    %v42 = vadd.f32 %v40, %v41
    %v43 = vrot.slane %v42, 2
    %v44 = vadd.f32 %v42, %v43
    %v45 = vrot.slane %v44, 1
    %v46 = vadd.f32 %v44, %v45
    %s47 = vtos %v46
    %s48 = smul.f32 %s32, 0.125
    %s49 = smul.f32 %s47, 0.04
    %s50 = smul.f32 %s49, 0.020833334
    %s51 = sadd.f32 %s48, %s50
    %s52 = smul.f32 %s51, 0.5
    %v53 = vstv %s52
    %vm54 = vcmask 0
    %55 = vst.msk [vmem:[#allocation2] sm:$0x1] %vm54, %v53
    // Predicated region
    $region18: #{_fused_loss.1} parent=1 // pred_check
      _
    $region19: #{_fused_loss.1} parent=1 // pred_check_branch
      %57 = sbr.rel (0) target = $region21
    $region20: #{_fused_loss.1} parent=1 // pred_region
      %59 = vsyncadd [#allocation3], 0
      %s61 = sshll.u32 [#allocation2], 4
      %s62 = int_to_ptr.vmem [resolvable:$true] %s61
      %s63 = sshll.u32 %s4, 4
      %s64 = int_to_ptr.hbm [resolvable:$true] %s63
      %66 = dma.vmem_to_hbm [thread:$0]  %s62, 16, %s64, [#allocation3]
    $region21: #{_fused_loss.1} parent=1 // pred_fallthru
      _
    // Predicated region
    $region22: #{_fused_loss.1} parent=1 // pred_check
      _
    $region23: #{_fused_loss.1} parent=1 // pred_check_branch
      %68 = sbr.rel (0) target = $region25
    $region24: #{_fused_loss.1} parent=1 // pred_region
      %70 = dma.done [#allocation3], 16
    $region25: #{_fused_loss.1} parent=1 // pred_fallthru
      _
    %71 = vsyncpa [#allocation3], 1

</llo_original>
